<compile_context>
chip_gen: v7x
topology: tpu7x:2x2x1
jax: 0.10.0
libtpu: 0.0.40
codegen_flags: <defaults>
</compile_context>

<pallas_src>
import functools

import jax
import jax.numpy as jnp
from jax.experimental import pallas as pl
from jax.experimental.pallas import tpu as pltpu


def _silu(y):
    # SiLU(x) = x * sigmoid(x); exp goes to the EUP slot.
    return y * (1.0 / (1.0 + jnp.exp(-y)))


def _linear_kernel_single_k(x_ref, w_ref, b_ref, o_ref, *, act):
    # K fits in one block: no reduction axis, no accumulator, no pl.when.
    y = jnp.dot(x_ref[...], w_ref[...], preferred_element_type=jnp.float32)
    y = y + b_ref[...].astype(jnp.float32)
    if act:
        y = _silu(y)
    o_ref[...] = y.astype(o_ref.dtype)


def _linear_kernel_multi_k(x_ref, w_ref, b_ref, o_ref, acc_ref, *, act):
    k = pl.program_id(2)

    @pl.when(k == 0)
    def _():
        acc_ref[...] = jnp.zeros_like(acc_ref)

    acc_ref[...] += jnp.dot(
        x_ref[...], w_ref[...], preferred_element_type=jnp.float32
    )

    @pl.when(k == pl.num_programs(2) - 1)
    def _():
        y = acc_ref[...] + b_ref[...].astype(jnp.float32)
        if act:
            y = _silu(y)
        o_ref[...] = y.astype(o_ref.dtype)


def _round_up(x, m):
    return ((x + m - 1) // m) * m


def basic_linear(hidden_state, weight_t, bias, *, act=False,
                 tm=None, tn=None, tk=None):
    """y = hidden_state @ weight_t + bias, optionally SiLU-activated.

    hidden_state: (..., K)   weight_t: (K, N)   bias: (N,)
    """
    *lead, K = hidden_state.shape
    Kw, N = weight_t.shape
    assert K == Kw, f"shape mismatch: {K} vs {Kw}"
    M = 1
    for d in lead:
        M *= d

    x2d = hidden_state.reshape(M, K)
    dtype = x2d.dtype
    itemsize = jnp.dtype(dtype).itemsize
    out_itemsize = itemsize
    # sublane alignment of the second-minor dim: 8 (f32) / 16 (bf16) / 32 (i8)
    sub = max(8, 32 // max(itemsize, 1))

    # ---- tile selection: big, aligned tiles, clamped to the problem ----
    Mp = _round_up(M, sub)
    Np = _round_up(N, 128)
    Kp = _round_up(K, 128)

    if tm is None:
        tm = 256
    if tn is None:
        tn = 512
    if tk is None:
        # Keep K resident when it fits; otherwise stream 2K-wide chunks
        # (amortizes the weight DMA, which dominates bytes for small M).
        tk = 2048
    tm = min(_round_up(tm, sub), Mp)
    tn = min(_round_up(tn, 128), Np)
    tk = min(_round_up(tk, 128), Kp)

    # v7x megacore: keep at least 2 blocks on a parallel axis when possible.
    if Mp <= tm and Np <= tn and Np >= 256:
        tn = _round_up(Np // 2, 128)

    # Final padded extents are tile multiples (zero-padding along K keeps the
    # matmul exact; padded M/N rows/cols are sliced off at the end).
    Mp = _round_up(M, tm)
    Np = _round_up(N, tn)
    Kp = _round_up(K, tk)

    if (Mp, Kp) != (M, K):
        x2d = jnp.pad(x2d, ((0, Mp - M), (0, Kp - K)))
    w2d = weight_t
    if (Kp, Np) != (K, N):
        w2d = jnp.pad(w2d, ((0, Kp - K), (0, Np - N)))
    b2d = bias.reshape(1, N)
    if Np != N:
        b2d = jnp.pad(b2d, ((0, 0), (0, Np - N)))

    gm, gn, gk = Mp // tm, Np // tn, Kp // tk

    # ---- VMEM budget: double-buffered inputs + double-buffered out + f32 acc
    in_bytes = 2 * (tm * tk + tk * tn) * itemsize
    out_bytes = 2 * tm * tn * out_itemsize
    acc_bytes = tm * tn * 4
    bias_bytes = 2 * tn * jnp.dtype(b2d.dtype).itemsize
    needed = in_bytes + out_bytes + acc_bytes + bias_bytes
    # headroom, but capped so it stays safe on v7x (64 MiB physical) / v5e.
    vmem_limit = int(min(2 * needed + (4 << 20), 48 << 20))

    cost = pl.CostEstimate(
        flops=2 * Mp * Np * Kp,
        transcendentals=(Mp * Np if act else 0),
        bytes_accessed=(Mp * Kp + Kp * Np) * itemsize
        + Np * jnp.dtype(b2d.dtype).itemsize
        + Mp * Np * out_itemsize,
    )

    if gk == 1:
        grid = (gm, gn)
        kern = functools.partial(_linear_kernel_single_k, act=act)
        in_specs = [
            pl.BlockSpec((tm, tk), lambda i, j: (i, 0)),
            pl.BlockSpec((tk, tn), lambda i, j: (0, j)),
            pl.BlockSpec((1, tn), lambda i, j: (0, j)),
        ]
        out_specs = pl.BlockSpec((tm, tn), lambda i, j: (i, j))
        scratch = ()
        dims = ("parallel", "parallel")
    else:
        grid = (gm, gn, gk)
        kern = functools.partial(_linear_kernel_multi_k, act=act)
        in_specs = [
            pl.BlockSpec((tm, tk), lambda i, j, k: (i, k)),
            pl.BlockSpec((tk, tn), lambda i, j, k: (k, j)),
            pl.BlockSpec((1, tn), lambda i, j, k: (0, j)),
        ]
        out_specs = pl.BlockSpec((tm, tn), lambda i, j, k: (i, j))
        scratch = (pltpu.VMEM((tm, tn), jnp.float32),)
        dims = ("parallel", "parallel", "arbitrary")

    out = pl.pallas_call(
        kern,
        out_shape=jax.ShapeDtypeStruct((Mp, Np), dtype),
        grid_spec=pltpu.PrefetchScalarGridSpec(
            num_scalar_prefetch=0,
            grid=grid,
            in_specs=in_specs,
            out_specs=out_specs,
            scratch_shapes=scratch,
        ),
        compiler_params=pltpu.CompilerParams(
            dimension_semantics=dims,
            vmem_limit_bytes=vmem_limit,
        ),
        cost_estimate=cost,
    )(x2d, w2d, b2d)

    out = out[:M, :N]
    return out.reshape(*lead, N)


def init_basic_linear_params(key, input_size, output_size, dtype=jnp.float32):
    """Deterministic synthetic params (PyTorch nn.Linear shape conventions)."""
    kw, kb = jax.random.split(key)
    bound = 1.0 / (input_size ** 0.5)
    # PyTorch stores weight as (out, in); we keep its transpose (in, out).
    weight_t = jax.random.uniform(
        kw, (input_size, output_size), dtype, minval=-bound, maxval=bound
    )
    bias = jax.random.uniform(
        kb, (output_size,), dtype, minval=-bound, maxval=bound
    )
    return weight_t, bias


if __name__ == "__main__":
    key = jax.random.PRNGKey(0)
    k_x, k_p, k_x2, k_p2 = jax.random.split(key, 4)

    # --- small case (single-K fast path) -----------------------------------
    batch, seq, input_size, output_size = 2, 8, 32, 64
    x = jax.random.normal(k_x, (batch, seq, input_size), jnp.float32)
    weight_t, bias = init_basic_linear_params(k_p, input_size, output_size)

    # act=True path (Linear + SiLU), matching BasicLinear(act=True).forward
    y = jax.block_until_ready(basic_linear(x, weight_t, bias, act=True))
    ref = x @ weight_t + bias
    ref = ref * jax.nn.sigmoid(ref)
    assert jnp.allclose(y, ref, atol=1e-5, rtol=1e-5), "mismatch (act=True)"

    # act=False path (plain Linear), matching BasicLinear(act=False).forward
    y2 = jax.block_until_ready(basic_linear(x, weight_t, bias, act=False))
    assert jnp.allclose(y2, x @ weight_t + bias, atol=1e-5, rtol=1e-5), \
        "mismatch (act=False)"

    # --- non-divisible shapes + forced multi-K accumulator path -------------
    K2, N2 = 300, 200
    x_b = jax.random.normal(k_x2, (batch, seq, K2), jnp.float32)
    w_b, b_b = init_basic_linear_params(k_p2, K2, N2)
    y3 = jax.block_until_ready(
        basic_linear(x_b, w_b, b_b, act=True, tk=128)  # gk > 1
    )
    ref3 = x_b @ w_b + b_b
    ref3 = ref3 * jax.nn.sigmoid(ref3)
    assert jnp.allclose(y3, ref3, atol=1e-4, rtol=1e-4), "mismatch (multi-K)"

    print("KERNEL_OK")
</pallas_src>

<mosaic_0001>
module attributes {stable_mosaic.version = 11 : i64} {
  func.func @_linear_kernel_single_k(%arg0: i32, %arg1: i32, %arg2: memref<16x128xf32, #tpu.memory_space<vmem>>, %arg3: memref<128x128xf32, #tpu.memory_space<vmem>>, %arg4: memref<1x128xf32, #tpu.memory_space<vmem>>, %arg5: memref<16x128xf32, #tpu.memory_space<vmem>>) attributes {dimension_semantics = [#tpu.dimension_semantics<parallel>, #tpu.dimension_semantics<parallel>], iteration_bounds = array<i64: 1, 1>, scalar_prefetch = 0 : i64, scratch_operands = 0 : i64, tpu.core_type = #tpu.core_type<tc>, window_params = [{transform_indices = @transform_0, window_bounds = array<i64: 16, 128>}, {transform_indices = @transform_1, window_bounds = array<i64: 128, 128>}, {transform_indices = @transform_2, window_bounds = array<i64: 1, 128>}, {transform_indices = @transform_3, window_bounds = array<i64: 16, 128>}]} {
    %c0 = arith.constant 0 : index
    %c0_0 = arith.constant 0 : index
    %0 = vector.load %arg2[%c0, %c0_0] : memref<16x128xf32, #tpu.memory_space<vmem>>, vector<16x128xf32>
    %c0_1 = arith.constant 0 : index
    %c0_2 = arith.constant 0 : index
    %1 = vector.load %arg3[%c0_1, %c0_2] : memref<128x128xf32, #tpu.memory_space<vmem>>, vector<128x128xf32>
    %cst = arith.constant dense<0.000000e+00> : vector<16x128xf32>
    %2 = tpu.matmul %0, %1, %cst {dimension_numbers = #tpu.dot_dimension_numbers<[1], [0], [0], [1], [0, 0, 1, 1], [], []>} : vector<16x128xf32>, vector<128x128xf32>, vector<16x128xf32> -> vector<16x128xf32>
    %c0_3 = arith.constant 0 : index
    %c0_4 = arith.constant 0 : index
    %3 = vector.load %arg4[%c0_3, %c0_4] : memref<1x128xf32, #tpu.memory_space<vmem>>, vector<1x128xf32>
    %4 = vector.broadcast %3 : vector<1x128xf32> to vector<16x128xf32>
    %5 = arith.addf %2, %4 : vector<16x128xf32>
    %cst_5 = arith.constant 0.000000e+00 : f32
    %6 = vector.broadcast %cst_5 : f32 to vector<16x128xf32>
    %7 = arith.subf %6, %5 : vector<16x128xf32>
    %8 = math.exp %7 : vector<16x128xf32>
    %cst_6 = arith.constant 1.000000e+00 : f32
    %9 = vector.broadcast %cst_6 : f32 to vector<16x128xf32>
    %10 = arith.addf %9, %8 : vector<16x128xf32>
    %cst_7 = arith.constant 1.000000e+00 : f32
    %11 = vector.broadcast %cst_7 : f32 to vector<16x128xf32>
    %12 = arith.divf %11, %10 : vector<16x128xf32>
    %13 = arith.mulf %5, %12 : vector<16x128xf32>
    %c0_8 = arith.constant 0 : index
    %c0_9 = arith.constant 0 : index
    %14 = vector.load %arg5[%c0_8, %c0_9] : memref<16x128xf32, #tpu.memory_space<vmem>>, vector<16x128xf32>
    tpu.vector_store %arg5[%c0_8, %c0_9], %13 {strides = array<i32>} : memref<16x128xf32, #tpu.memory_space<vmem>>, vector<16x128xf32>,
    return
  }
  func.func @transform_0(%arg0: i32, %arg1: i32) -> (i32, i32) {
    %c0_i32 = arith.constant 0 : i32
    %c0_i32_0 = arith.constant 0 : i32
    return %arg0, %c0_i32 : i32, i32
  }
  func.func @transform_1(%arg0: i32, %arg1: i32) -> (i32, i32) {
    %c0_i32 = arith.constant 0 : i32
    %c0_i32_0 = arith.constant 0 : i32
    return %c0_i32, %arg1 : i32, i32
  }
  func.func @transform_2(%arg0: i32, %arg1: i32) -> (i32, i32) {
    %c0_i32 = arith.constant 0 : i32
    %c0_i32_0 = arith.constant 0 : i32
    return %c0_i32, %arg1 : i32, i32
  }
  func.func @transform_3(%arg0: i32, %arg1: i32) -> (i32, i32) {
    %c0_i32 = arith.constant 0 : i32
    return %arg0, %arg1 : i32, i32
  }
}

</mosaic_0001>

<llo_original>
// kernel: tpu_custom_call.1
$region0: #{tpu_custom_call.1}
  #allocation0 [shape = 'u32[]', space=smem, size = 0x4, offset = 0x4, fixed_abs, tag = 'smem constant byte address 0x4 - core index']
  #allocation1 [shape = 'u32[144,128]{1,0:T(1,128)}', space=vmem, size = 0x12000, scoped, tag = 'internal scratch']
  %s0 = inlined_call_operand.hbm [shape: f32[16,128], index: 0, kind: input, shape index: {}]
  %s1 = inlined_call_operand.hbm [shape: f32[128,128], index: 1, kind: input, shape index: {}]
  %s2 = inlined_call_operand.vmem [shape: f32[1,128], index: 2, kind: input, shape index: {}]
  %s3 = inlined_call_operand.hbm [shape: f32[16,128], index: 3, kind: output, shape index: {}]
  %s4 = sld [smem:[#allocation0]]
  $region30: #{tpu_custom_call.1} parent=0
    _
  %s6 = ssub.s32 1, %s4
  %s7 = scalar_select 0, %s6, %s4
  $region1: #{tpu_custom_call.1} parent=0
    #allocation2 [shape = 'u8[8192]{0}', space=vmem, size = 0x2000, scoped, tag = 'input window, operand 0, single buffered']
    #allocation3 [shape = 's32[1]{0}', space=sflag, size = 0x4, scoped, tag = 'scoped memory for tpu_custom_call.1']
    #allocation4 [shape = 's32[1]{0}', space=sflag, size = 0x4, scoped, tag = 'scoped memory for tpu_custom_call.1']
    #allocation5 [shape = 'u8[65536]{0}', space=vmem, size = 0x10000, scoped, tag = 'input window, operand 1, single buffered']
    #allocation6 [shape = 's32[1]{0}', space=sflag, size = 0x4, scoped, tag = 'scoped memory for tpu_custom_call.1']
    #allocation7 [shape = 'u8[8192]{0}', space=vmem, size = 0x2000, scoped, tag = 'output window, operand 0, single buffered']
    %8 = vsyncpa [#allocation3], 0
    %9 = vsyncpa [#allocation6], 0
    %10 = vsyncpa [#allocation4], 0
    // Predicated region
    $region2: #{tpu_custom_call.1} parent=1 // pred_check
      _
    $region3: #{tpu_custom_call.1} parent=1 // pred_check_branch
      %12 = sbr.rel (0) target = $region5
    $region4: #{tpu_custom_call.1} parent=1 // pred_region
      %s14 = ssub.s32 256, 256
      %15 = vsyncadd [#allocation3], %s14
      %s16 = sshll.u32 [#allocation2], 4
      %s17 = int_to_ptr.vmem [resolvable:$true] %s16
      %22 = dma.hbm_to_vmem [thread:$0]  %s0, 256, %s17, [#allocation3], 128, 128, 8
    $region5: #{tpu_custom_call.1} parent=1 // pred_fallthru
      _
    // Predicated region
    $region6: #{tpu_custom_call.1} parent=1 // pred_check
      _
    $region7: #{tpu_custom_call.1} parent=1 // pred_check_branch
      %24 = sbr.rel (0) target = $region9
    $region8: #{tpu_custom_call.1} parent=1 // pred_region
      %s26 = ssub.s32 2048, 2048
      %27 = vsyncadd [#allocation6], %s26
      %s28 = sshll.u32 [#allocation5], 4
      %s29 = int_to_ptr.vmem [resolvable:$true] %s28
      %34 = dma.hbm_to_vmem [thread:$0]  %s1, 2048, %s29, [#allocation6], 128, 128, 8
    $region9: #{tpu_custom_call.1} parent=1 // pred_fallthru
      _
    // Predicated region
    $region10: #{tpu_custom_call.1} parent=1 // pred_check
      _
    $region11: #{tpu_custom_call.1} parent=1 // pred_check_branch
      %36 = sbr.rel (0) target = $region13
    $region12: #{tpu_custom_call.1} parent=1 // pred_region
      _
    $region13: #{tpu_custom_call.1} parent=1 // pred_fallthru
      _
    // Predicated region
    $region14: #{tpu_custom_call.1} parent=1 // pred_check
      _
    $region15: #{tpu_custom_call.1} parent=1 // pred_check_branch
      %38 = sbr.rel (0) target = $region17
    $region16: #{tpu_custom_call.1} parent=1 // pred_region
      %39 = dma.done [#allocation3], 256
    $region17: #{tpu_custom_call.1} parent=1 // pred_fallthru
      _
    // Predicated region
    $region18: #{tpu_custom_call.1} parent=1 // pred_check
      _
    $region19: #{tpu_custom_call.1} parent=1 // pred_check_branch
      %41 = sbr.rel (0) target = $region21
    $region20: #{tpu_custom_call.1} parent=1 // pred_region
      %42 = dma.done [#allocation6], 2048
    $region21: #{tpu_custom_call.1} parent=1 // pred_fallthru
      _
    %v43 = vld [vmem:[#allocation2] sm:$0xff]
    %v44 = vld [vmem:[#allocation2 + $0x8] sm:$0xff]
    %v45 = vld [vmem:[#allocation5] sm:$0xff]
    %v46 = vld [vmem:[#allocation5 + $0x8] sm:$0xff]
    %v47 = vld [vmem:[#allocation5 + $0x10] sm:$0xff]
    %v48 = vld [vmem:[#allocation5 + $0x18] sm:$0xff]
    %v49 = vld [vmem:[#allocation5 + $0x20] sm:$0xff]
    %v50 = vld [vmem:[#allocation5 + $0x28] sm:$0xff]
    %v51 = vld [vmem:[#allocation5 + $0x30] sm:$0xff]
    %v52 = vld [vmem:[#allocation5 + $0x38] sm:$0xff]
    %v53 = vld [vmem:[#allocation5 + $0x40] sm:$0xff]
    %v54 = vld [vmem:[#allocation5 + $0x48] sm:$0xff]
    %v55 = vld [vmem:[#allocation5 + $0x50] sm:$0xff]
    %v56 = vld [vmem:[#allocation5 + $0x58] sm:$0xff]
    %v57 = vld [vmem:[#allocation5 + $0x60] sm:$0xff]
    %v58 = vld [vmem:[#allocation5 + $0x68] sm:$0xff]
    %v59 = vld [vmem:[#allocation5 + $0x70] sm:$0xff]
    %v60 = vld [vmem:[#allocation5 + $0x78] sm:$0xff]
    %v61 = vld [vmem:[%s2] sm:$0x1]
    %v63 = vlaneseq
    %v64 = vshrl.u32 %v63, 7
    %v65 = vsub.s32 0, %v64
    %v66 = vrot.slane %v61, %v65
    %68 = vmatprep.subr.mxu0 0.0
    %69 = vmatpush1.msra.mxu0 %v45
    %70 = vmatprep.subr.mxu0 0.0
    %71 = vmatpush1.msra.mxu0 %v46
    %72 = vmatprep.subr.mxu0 0.0
    %73 = vmatpush1.msra.mxu0 %v47
    %74 = vmatprep.subr.mxu0 0.0
    %75 = vmatpush1.msra.mxu0 %v48
    %76 = vmatprep.subr.mxu0 0.0
    %77 = vmatpush1.msra.mxu0 %v49
    %78 = vmatprep.subr.mxu0 0.0
    %79 = vmatpush1.msra.mxu0 %v50
    %80 = vmatprep.subr.mxu0 0.0
    %81 = vmatpush1.msra.mxu0 %v51
    %82 = vmatprep.subr.mxu0 0.0
    %83 = vmatpush1.msra.mxu0 %v52
    %84 = vmatprep.subr.mxu0 0.0
    %85 = vmatpush1.msra.mxu0 %v53
    %86 = vmatprep.subr.mxu0 0.0
    %87 = vmatpush1.msra.mxu0 %v54
    %88 = vmatprep.subr.mxu0 0.0
    %89 = vmatpush1.msra.mxu0 %v55
    %90 = vmatprep.subr.mxu0 0.0
    %91 = vmatpush1.msra.mxu0 %v56
    %92 = vmatprep.subr.mxu0 0.0
    %93 = vmatpush1.msra.mxu0 %v57
    %94 = vmatprep.subr.mxu0 0.0
    %95 = vmatpush1.msra.mxu0 %v58
    %96 = vmatprep.subr.mxu0 0.0
    %97 = vmatpush1.msra.mxu0 %v59
    %98 = vmatprep.subr.mxu0 0.0
    %99 = vmatpush1.msra.mxu0 %v60
    %100 = vmatprep.subr.mxu0 0.0
    %101 = vmatpush1.msra.mxu0 0.0
    %102 = vmatprep.subr.mxu0 0.0
    %103 = vmatpush1.msra.mxu0 0.0
    %104 = vmatprep.subr.mxu0 0.0
    %105 = vmatpush1.msra.mxu0 0.0
    %106 = vmatprep.subr.mxu0 0.0
    %107 = vmatpush1.msra.mxu0 0.0
    %108 = vmatprep.subr.mxu0 0.0
    %109 = vmatpush1.msra.mxu0 0.0
    %110 = vmatprep.subr.mxu0 0.0
    %111 = vmatpush1.msra.mxu0 0.0
    %112 = vmatprep.subr.mxu0 0.0
    %113 = vmatpush1.msra.mxu0 0.0
    %114 = vmatprep.subr.mxu0 0.0
    %115 = vmatpush1.msra.mxu0 0.0
    %116 = vmatprep.subr.mxu0 0.0
    %117 = vmatpush1.msra.mxu0 0.0
    %118 = vmatprep.subr.mxu0 0.0
    %119 = vmatpush1.msra.mxu0 0.0
    %120 = vmatprep.subr.mxu0 0.0
    %121 = vmatpush1.msra.mxu0 0.0
    %122 = vmatprep.subr.mxu0 0.0
    %123 = vmatpush1.msra.mxu0 0.0
    %124 = vmatprep.subr.mxu0 0.0
    %125 = vmatpush1.msra.mxu0 0.0
    %126 = vmatprep.subr.mxu0 0.0
    %127 = vmatpush1.msra.mxu0 0.0
    %128 = vmatprep.subr.mxu0 0.0
    %129 = vmatpush1.msra.mxu0 0.0
    %130 = vmatprep.subr.mxu0 0.0
    %131 = vmatpush1.msra.mxu0 0.0
    %132 = vmatprep.mubr.f32.mxu0 0.0
    %133 = vmatmul.mubr.f32.gmra.mrb[0].mxu0 %v43
    %v134 = vpop.f32.mrb[0].mxu0
    %v135 = vadd.f32 %v66, %v134
    %v136 = vpop.f32.mrb[0].mxu0
    %137 = vmatprep.mubr.f32.mxu0 0.0
    %138 = vmatmul.mubr.f32.gmra.mrb[0].mxu0 %v44
    %v139 = vpop.f32.mrb[0].mxu0
    %v140 = vadd.f32 %v66, %v139
    %v141 = vpop.f32.mrb[0].mxu0
    %142 = vdwg.mxu0
    %v143 = vsub.f32 0.0, %v135
    %v144 = vsub.f32 0.0, %v140
    %v145 = vmul.f32 %v143, 1.442695
    %v146 = vpow.pop %v145
    %v147 = vmul.f32 %v144, 1.442695
    %v148 = vpow.pop %v147
    %v149 = vadd.f32 %v146, 1.0
    %v150 = vadd.f32 %v148, 1.0
    %v151 = vrcp.pop %v149
    %v152 = vmul.f32 1.0, %v151
    %v153 = vrcp.pop %v150
    %v154 = vmul.f32 1.0, %v153
    %v155 = vmul.f32 %v135, %v152
    %v156 = vmul.f32 %v140, %v154
    %157 = vst [vmem:[#allocation7] sm:$0xff] %v155
    %158 = vst [vmem:[#allocation7 + $0x8] sm:$0xff] %v156
    // Predicated region
    $region22: #{tpu_custom_call.1} parent=1 // pred_check
      _
    $region23: #{tpu_custom_call.1} parent=1 // pred_check_branch
      %160 = sbr.rel (0) target = $region25
    $region24: #{tpu_custom_call.1} parent=1 // pred_region
      %s162 = ssub.s32 256, 256
      %163 = vsyncadd [#allocation4], %s162
      %s164 = sshll.u32 [#allocation7], 4
      %s165 = int_to_ptr.vmem [resolvable:$true] %s164
      %170 = dma.vmem_to_hbm [thread:$0]  %s165, 256, %s3, [#allocation4], 128, 128, 8
    $region25: #{tpu_custom_call.1} parent=1 // pred_fallthru
      _
    // Predicated region
    $region26: #{tpu_custom_call.1} parent=1 // pred_check
      _
    $region27: #{tpu_custom_call.1} parent=1 // pred_check_branch
      %172 = sbr.rel (0) target = $region29
    $region28: #{tpu_custom_call.1} parent=1 // pred_region
      %173 = dma.done [#allocation4], 256
    $region29: #{tpu_custom_call.1} parent=1 // pred_fallthru
      _
    %174 = vsyncpa [#allocation3], 1
    %175 = vsyncpa [#allocation6], 1
    %176 = vsyncpa [#allocation4], 1

</llo_original>
